<compile_context>
chip_gen: v7x
topology: tpu7x:2x2x1
jax: 0.10.0
libtpu: 0.0.40
codegen_flags: <defaults>
</compile_context>

<pallas_src>
import functools

import jax
import jax.numpy as jnp
from jax.experimental import pallas as pl
from jax.experimental.pallas import tpu as pltpu

_LANE = 128      # lane granule (last dim)
_SUBLANE = 8     # sublane granule (second-to-last dim)


def _round_up(x: int, m: int) -> int:
    return (x + m - 1) // m * m


def _pick_tile(dim: int, granule: int, max_tile: int):
    """Pick (tile, padded_dim) for a granule-aligned dim.

    Prefers a large exact divisor (zero extra padding); otherwise the largest
    tile with modest padding waste; falls back to the granule itself.
    """
    if dim <= max_tile:
        return dim, dim
    max_tile -= max_tile % granule
    # Pass 1: large exact divisor -> no padding beyond the granule.
    for t in range(max_tile, max_tile // 2 - 1, -granule):
        if dim % t == 0:
            return t, dim
    # Pass 2: largest tile whose padding waste is small.
    for t in range(max_tile, granule - 1, -granule):
        padded = _round_up(dim, t)
        if padded - dim <= max(dim // 8, granule):
            return t, padded
    return granule, dim


def _linear_kernel_fused(x_ref, w_ref, b_ref, o_ref, *, mxu_dtype):
    """K collapsed into one block: single matmul + bias, no accumulator."""
    acc = jnp.dot(
        x_ref[...].astype(mxu_dtype),
        w_ref[...].astype(mxu_dtype),
        preferred_element_type=jnp.float32,
    )
    o_ref[...] = (acc + b_ref[...]).astype(o_ref.dtype)


def _linear_kernel_acc(x_ref, w_ref, b_ref, o_ref, acc_ref, *, mxu_dtype):
    """One (tm, tn) output tile accumulated over the K grid axis."""
    k = pl.program_id(2)

    @pl.when(k == 0)
    def _():
        acc_ref[...] = jnp.zeros_like(acc_ref)

    acc_ref[...] += jnp.dot(
        x_ref[...].astype(mxu_dtype),
        w_ref[...].astype(mxu_dtype),
        preferred_element_type=jnp.float32,
    )

    @pl.when(k == pl.num_programs(2) - 1)
    def _():
        o_ref[...] = (acc_ref[...] + b_ref[...]).astype(o_ref.dtype)


@functools.partial(
    jax.jit,
    static_argnames=("out_dim", "tm", "tn", "tk", "mxu_dtype", "vmem_budget_bytes"),
)
def linear_forward(
    x,
    w,
    b,
    *,
    out_dim: int | None = None,
    tm: int = 512,
    tn: int = 512,
    tk: int = 1024,
    mxu_dtype=jnp.float32,
    vmem_budget_bytes: int = 40 << 20,   # re-derived for v7x's 64 MiB VMEM
):
    """y = x @ w + b.  x: (B, D_in), w: (D_in[, padded], D_out[, padded]), b: (1, D_out[, padded])."""
    B, D_in = x.shape
    Kw, Nw = w.shape
    if out_dim is None:
        out_dim = Nw

    # Granule padding targets (weights are normally pre-padded at model init,
    # so on the hot path only x needs padding below).
    Bg = _round_up(B, _SUBLANE)
    Kg = _round_up(max(D_in, Kw), _LANE)
    Ng = _round_up(Nw, _LANE)

    # M / N tiles from the granule-padded dims.
    tm, Bp = _pick_tile(Bg, _SUBLANE, min(tm, 512))
    tn, Np = _pick_tile(Ng, _LANE, min(tn, 512))

    # Collapse the K grid axis when the fused tiles fit the VMEM budget
    # (2x x-tile + 2x w-tile + 2x out-tile + bias, double-buffered).
    fused_bytes = 4 * (2 * tm * Kg + 2 * Kg * tn + 2 * tm * tn + 2 * tn)
    collapse_k = fused_bytes <= vmem_budget_bytes

    if collapse_k:
        tk, Kp = Kg, Kg
        k_steps = 1
    else:
        tk, Kp = _pick_tile(Kg, _LANE, min(tk, 1024))
        k_steps = Kp // tk

    # Zero padding is exact: padded K rows/cols contribute 0, padded M/N
    # rows/cols are sliced off before returning.
    if (B, D_in) != (Bp, Kp):
        x = jnp.pad(x, ((0, Bp - B), (0, Kp - D_in)))
    if (Kw, Nw) != (Kp, Np):
        w = jnp.pad(w, ((0, Kp - Kw), (0, Np - Nw)))
    b = b.reshape(1, -1)
    if b.shape[1] != Np:
        b = jnp.pad(b, ((0, 0), (0, Np - b.shape[1])))

    flops = 2 * Bp * Kp * Np
    bytes_accessed = 4 * (Bp * Kp + Kp * Np + Np + Bp * Np)
    cost = pl.CostEstimate(
        flops=flops, transcendentals=0, bytes_accessed=bytes_accessed
    )

    if collapse_k:
        vmem_limit = int(min(max(fused_bytes + (2 << 20), 16 << 20), 48 << 20))
        out = pl.pallas_call(
            functools.partial(_linear_kernel_fused, mxu_dtype=mxu_dtype),
            out_shape=jax.ShapeDtypeStruct((Bp, Np), x.dtype),
            grid=(Bp // tm, Np // tn),
            in_specs=[
                pl.BlockSpec((tm, Kp), lambda i, j: (i, 0)),   # x: N-invariant
                pl.BlockSpec((Kp, tn), lambda i, j: (0, j)),   # w: M-invariant
                pl.BlockSpec((1, tn), lambda i, j: (0, j)),    # bias
            ],
            out_specs=pl.BlockSpec((tm, tn), lambda i, j: (i, j)),
            compiler_params=pltpu.CompilerParams(
                dimension_semantics=("parallel", "parallel"),
                vmem_limit_bytes=vmem_limit,
            ),
            cost_estimate=cost,
        )(x, w, b)
    else:
        n_buf = 3 if k_steps > 2 else 2
        tiled_bytes = 4 * (
            n_buf * tm * tk          # x stream
            + n_buf * tk * tn        # w stream
            + 2 * tm * tn            # output double-buffer
            + tm * tn                # f32 accumulator scratch
            + 2 * tn                 # bias
        )
        vmem_limit = int(min(max(tiled_bytes + (2 << 20), 16 << 20), 48 << 20))
        out = pl.pallas_call(
            functools.partial(_linear_kernel_acc, mxu_dtype=mxu_dtype),
            out_shape=jax.ShapeDtypeStruct((Bp, Np), x.dtype),
            grid=(Bp // tm, Np // tn, k_steps),
            in_specs=[
                pl.BlockSpec((tm, tk), lambda i, j, k: (i, k),
                             pipeline_mode=pl.Buffered(n_buf)),
                pl.BlockSpec((tk, tn), lambda i, j, k: (k, j),
                             pipeline_mode=pl.Buffered(n_buf)),
                pl.BlockSpec((1, tn), lambda i, j, k: (0, j)),  # K-invariant
            ],
            out_specs=pl.BlockSpec((tm, tn), lambda i, j, k: (i, j)),
            scratch_shapes=[pltpu.VMEM((tm, tn), jnp.float32)],
            compiler_params=pltpu.CompilerParams(
                dimension_semantics=("parallel", "parallel", "arbitrary"),
                vmem_limit_bytes=vmem_limit,
            ),
            cost_estimate=cost,
        )(x, w, b)

    if (Bp, Np) != (B, out_dim):
        out = out[:B, :out_dim]
    return out


class LinearModelPallas:
    """Pallas equivalent of the torch LinearModel (depth-1 linear stack)."""

    def __init__(self, input_dim: int, output_dim: int, key, *, mxu_dtype=jnp.float32):
        k_w, k_b = jax.random.split(key)
        # Mimic torch.nn.Linear init: U(-1/sqrt(fan_in), 1/sqrt(fan_in)).
        bound = 1.0 / float(input_dim) ** 0.5
        w = jax.random.uniform(
            k_w, (input_dim, output_dim), jnp.float32, -bound, bound
        )
        b = jax.random.uniform(k_b, (1, output_dim), jnp.float32, -bound, bound)

        # Pre-pad to lane granule ONCE at init (hoists the per-call jnp.pad of
        # the weight -- an extra full HBM read+write -- out of the forward).
        Kp = _round_up(input_dim, _LANE)
        Np = _round_up(output_dim, _LANE)
        self.w = jnp.pad(w, ((0, Kp - input_dim), (0, Np - output_dim)))
        self.b = jnp.pad(b, ((0, 0), (0, Np - output_dim)))
        self.w_unpadded = w
        self.b_unpadded = b

        self.input_dim = input_dim
        self.output_dim = output_dim
        # Set mxu_dtype=jnp.bfloat16 for compute-bound shapes on v6e/v7x
        # (f32 accumulation kept); default f32 matches torch numerics exactly.
        self.mxu_dtype = mxu_dtype
        self.depth = 1

    def __call__(self, x):
        temp = x
        for _ in range(self.depth):
            temp = linear_forward(
                temp, self.w, self.b,
                out_dim=self.output_dim, mxu_dtype=self.mxu_dtype,
            )
        return temp


if __name__ == "__main__":
    key = jax.random.PRNGKey(0)
    k_x, k_p = jax.random.split(key)

    # Small shapes consistent with the module's forward (x: (batch, input_dim)).
    batch, input_dim, output_dim = 8, 32, 16
    x = jax.random.normal(k_x, (batch, input_dim), jnp.float32)

    model = LinearModelPallas(input_dim, output_dim, k_p)
    y = jax.block_until_ready(model(x))

    y_ref = x @ model.w_unpadded + model.b_unpadded
    assert y.shape == (batch, output_dim)
    assert jnp.allclose(y, y_ref, atol=1e-5, rtol=1e-5)

    # Larger shape: exercises the fused (K-collapsed) path.
    B2, K2, N2 = 512, 768, 384
    k1, k2, k3 = jax.random.split(k_p, 3)
    x2 = jax.random.normal(k1, (B2, K2), jnp.float32)
    w2 = jax.random.normal(k2, (K2, N2), jnp.float32) * 0.02
    b2 = jax.random.normal(k3, (1, N2), jnp.float32)
    y2 = jax.block_until_ready(linear_forward(x2, w2, b2))
    y2_ref = x2 @ w2 + b2
    assert jnp.allclose(y2, y2_ref, atol=1e-3, rtol=1e-3)

    # Force the tiled-K accumulator path (multi-block M/N/K, Buffered(3),
    # pl.when init/finalize) by shrinking the fused-K VMEM budget.
    y3 = jax.block_until_ready(
        linear_forward(x2, w2, b2, tm=128, tn=128, tk=256,
                       vmem_budget_bytes=1 << 20)
    )
    assert jnp.allclose(y3, y2_ref, atol=1e-3, rtol=1e-3)

    print("KERNEL_OK")
</pallas_src>

<mosaic_0001>
module attributes {stable_mosaic.version = 11 : i64} {
  func.func @_linear_kernel_fused(%arg0: i32, %arg1: i32, %arg2: memref<8x128xf32, #tpu.memory_space<vmem>>, %arg3: memref<128x128xf32, #tpu.memory_space<vmem>>, %arg4: memref<1x128xf32, #tpu.memory_space<vmem>>, %arg5: memref<8x128xf32, #tpu.memory_space<vmem>>) attributes {dimension_semantics = [#tpu.dimension_semantics<parallel>, #tpu.dimension_semantics<parallel>], iteration_bounds = array<i64: 1, 1>, scalar_prefetch = 0 : i64, scratch_operands = 0 : i64, tpu.core_type = #tpu.core_type<tc>, window_params = [{transform_indices = @transform_0, window_bounds = array<i64: 8, 128>}, {transform_indices = @transform_1, window_bounds = array<i64: 128, 128>}, {transform_indices = @transform_2, window_bounds = array<i64: 1, 128>}, {transform_indices = @transform_3, window_bounds = array<i64: 8, 128>}]} {
    %c0 = arith.constant 0 : index
    %c0_0 = arith.constant 0 : index
    %0 = vector.load %arg2[%c0, %c0_0] : memref<8x128xf32, #tpu.memory_space<vmem>>, vector<8x128xf32>
    %c0_1 = arith.constant 0 : index
    %c0_2 = arith.constant 0 : index
    %1 = vector.load %arg3[%c0_1, %c0_2] : memref<128x128xf32, #tpu.memory_space<vmem>>, vector<128x128xf32>
    %cst = arith.constant dense<0.000000e+00> : vector<8x128xf32>
    %2 = tpu.matmul %0, %1, %cst {dimension_numbers = #tpu.dot_dimension_numbers<[1], [0], [0], [1], [0, 0, 1, 1], [], []>} : vector<8x128xf32>, vector<128x128xf32>, vector<8x128xf32> -> vector<8x128xf32>
    %c0_3 = arith.constant 0 : index
    %c0_4 = arith.constant 0 : index
    %3 = vector.load %arg4[%c0_3, %c0_4] : memref<1x128xf32, #tpu.memory_space<vmem>>, vector<1x128xf32>
    %4 = vector.broadcast %3 : vector<1x128xf32> to vector<8x128xf32>
    %5 = arith.addf %2, %4 : vector<8x128xf32>
    %c0_5 = arith.constant 0 : index
    %c0_6 = arith.constant 0 : index
    %6 = vector.load %arg5[%c0_5, %c0_6] : memref<8x128xf32, #tpu.memory_space<vmem>>, vector<8x128xf32>
    tpu.vector_store %arg5[%c0_5, %c0_6], %5 {strides = array<i32>} : memref<8x128xf32, #tpu.memory_space<vmem>>, vector<8x128xf32>,
    return
  }
  func.func @transform_0(%arg0: i32, %arg1: i32) -> (i32, i32) {
    %c0_i32 = arith.constant 0 : i32
    %c0_i32_0 = arith.constant 0 : i32
    return %arg0, %c0_i32 : i32, i32
  }
  func.func @transform_1(%arg0: i32, %arg1: i32) -> (i32, i32) {
    %c0_i32 = arith.constant 0 : i32
    %c0_i32_0 = arith.constant 0 : i32
    return %c0_i32, %arg1 : i32, i32
  }
  func.func @transform_2(%arg0: i32, %arg1: i32) -> (i32, i32) {
    %c0_i32 = arith.constant 0 : i32
    %c0_i32_0 = arith.constant 0 : i32
    return %c0_i32, %arg1 : i32, i32
  }
  func.func @transform_3(%arg0: i32, %arg1: i32) -> (i32, i32) {
    %c0_i32 = arith.constant 0 : i32
    return %arg0, %arg1 : i32, i32
  }
}

</mosaic_0001>

<llo_original>
// kernel: linear_forward.1
$region0: #{linear_forward.1}
  #allocation0 [shape = 'u32[]', space=smem, size = 0x4, offset = 0x4, fixed_abs, tag = 'smem constant byte address 0x4 - core index']
  #allocation1 [shape = 'u32[144,128]{1,0:T(1,128)}', space=vmem, size = 0x12000, scoped, tag = 'internal scratch']
  %s0 = inlined_call_operand.vmem [shape: f32[8,128], index: 0, kind: input, shape index: {}]
  %s1 = inlined_call_operand.hbm [shape: f32[128,128], index: 1, kind: input, shape index: {}]
  %s2 = inlined_call_operand.vmem [shape: f32[1,128], index: 2, kind: input, shape index: {}]
  %s3 = inlined_call_operand.hbm [shape: f32[8,128], index: 3, kind: output, shape index: {}]
  %s4 = sld [smem:[#allocation0]]
  $region26: #{linear_forward.1} parent=0
    _
  %s6 = ssub.s32 1, %s4
  %s7 = scalar_select 0, %s6, %s4
  $region1: #{linear_forward.1} parent=0
    #allocation2 [shape = 'u8[65536]{0}', space=vmem, size = 0x10000, scoped, tag = 'input window, operand 1, single buffered']
    #allocation3 [shape = 's32[1]{0}', space=sflag, size = 0x4, scoped, tag = 'scoped memory for linear_forward.1']
    #allocation4 [shape = 's32[1]{0}', space=sflag, size = 0x4, scoped, tag = 'scoped memory for linear_forward.1']
    #allocation5 [shape = 'u8[4096]{0}', space=vmem, size = 0x1000, scoped, tag = 'output window, operand 0, single buffered']
    %8 = vsyncpa [#allocation3], 0
    %9 = vsyncpa [#allocation4], 0
    // Predicated region
    $region2: #{linear_forward.1} parent=1 // pred_check
      _
    $region3: #{linear_forward.1} parent=1 // pred_check_branch
      %11 = sbr.rel (0) target = $region5
    $region4: #{linear_forward.1} parent=1 // pred_region
      _
    $region5: #{linear_forward.1} parent=1 // pred_fallthru
      _
    // Predicated region
    $region6: #{linear_forward.1} parent=1 // pred_check
      _
    $region7: #{linear_forward.1} parent=1 // pred_check_branch
      %13 = sbr.rel (0) target = $region9
    $region8: #{linear_forward.1} parent=1 // pred_region
      %s15 = ssub.s32 2048, 2048
      %16 = vsyncadd [#allocation3], %s15
      %s17 = sshll.u32 [#allocation2], 4
      %s18 = int_to_ptr.vmem [resolvable:$true] %s17
      %23 = dma.hbm_to_vmem [thread:$0]  %s1, 2048, %s18, [#allocation3], 128, 128, 8
    $region9: #{linear_forward.1} parent=1 // pred_fallthru
      _
    // Predicated region
    $region10: #{linear_forward.1} parent=1 // pred_check
      _
    $region11: #{linear_forward.1} parent=1 // pred_check_branch
      %25 = sbr.rel (0) target = $region13
    $region12: #{linear_forward.1} parent=1 // pred_region
      _
    $region13: #{linear_forward.1} parent=1 // pred_fallthru
      _
    // Predicated region
    $region14: #{linear_forward.1} parent=1 // pred_check
      _
    $region15: #{linear_forward.1} parent=1 // pred_check_branch
      %27 = sbr.rel (0) target = $region17
    $region16: #{linear_forward.1} parent=1 // pred_region
      %28 = dma.done [#allocation3], 2048
    $region17: #{linear_forward.1} parent=1 // pred_fallthru
      _
    %v29 = vld [vmem:[%s0] sm:$0xff]
    %v30 = vld [vmem:[#allocation2] sm:$0xff]
    %v31 = vld [vmem:[#allocation2 + $0x8] sm:$0xff]
    %v32 = vld [vmem:[#allocation2 + $0x10] sm:$0xff]
    %v33 = vld [vmem:[#allocation2 + $0x18] sm:$0xff]
    %v34 = vld [vmem:[#allocation2 + $0x20] sm:$0xff]
    %v35 = vld [vmem:[#allocation2 + $0x28] sm:$0xff]
    %v36 = vld [vmem:[#allocation2 + $0x30] sm:$0xff]
    %v37 = vld [vmem:[#allocation2 + $0x38] sm:$0xff]
    %v38 = vld [vmem:[#allocation2 + $0x40] sm:$0xff]
    %v39 = vld [vmem:[#allocation2 + $0x48] sm:$0xff]
    %v40 = vld [vmem:[#allocation2 + $0x50] sm:$0xff]
    %v41 = vld [vmem:[#allocation2 + $0x58] sm:$0xff]
    %v42 = vld [vmem:[#allocation2 + $0x60] sm:$0xff]
    %v43 = vld [vmem:[#allocation2 + $0x68] sm:$0xff]
    %v44 = vld [vmem:[#allocation2 + $0x70] sm:$0xff]
    %v45 = vld [vmem:[#allocation2 + $0x78] sm:$0xff]
    %v46 = vld [vmem:[%s2] sm:$0x1]
    %v48 = vlaneseq
    %v49 = vshrl.u32 %v48, 7
    %v50 = vsub.s32 0, %v49
    %v51 = vrot.slane %v46, %v50
    %53 = vmatprep.subr.mxu0 0.0
    %54 = vmatpush1.msra.mxu0 %v30
    %55 = vmatprep.subr.mxu0 0.0
    %56 = vmatpush1.msra.mxu0 %v31
    %57 = vmatprep.subr.mxu0 0.0
    %58 = vmatpush1.msra.mxu0 %v32
    %59 = vmatprep.subr.mxu0 0.0
    %60 = vmatpush1.msra.mxu0 %v33
    %61 = vmatprep.subr.mxu0 0.0
    %62 = vmatpush1.msra.mxu0 %v34
    %63 = vmatprep.subr.mxu0 0.0
    %64 = vmatpush1.msra.mxu0 %v35
    %65 = vmatprep.subr.mxu0 0.0
    %66 = vmatpush1.msra.mxu0 %v36
    %67 = vmatprep.subr.mxu0 0.0
    %68 = vmatpush1.msra.mxu0 %v37
    %69 = vmatprep.subr.mxu0 0.0
    %70 = vmatpush1.msra.mxu0 %v38
    %71 = vmatprep.subr.mxu0 0.0
    %72 = vmatpush1.msra.mxu0 %v39
    %73 = vmatprep.subr.mxu0 0.0
    %74 = vmatpush1.msra.mxu0 %v40
    %75 = vmatprep.subr.mxu0 0.0
    %76 = vmatpush1.msra.mxu0 %v41
    %77 = vmatprep.subr.mxu0 0.0
    %78 = vmatpush1.msra.mxu0 %v42
    %79 = vmatprep.subr.mxu0 0.0
    %80 = vmatpush1.msra.mxu0 %v43
    %81 = vmatprep.subr.mxu0 0.0
    %82 = vmatpush1.msra.mxu0 %v44
    %83 = vmatprep.subr.mxu0 0.0
    %84 = vmatpush1.msra.mxu0 %v45
    %85 = vmatprep.subr.mxu0 0.0
    %86 = vmatpush1.msra.mxu0 0.0
    %87 = vmatprep.subr.mxu0 0.0
    %88 = vmatpush1.msra.mxu0 0.0
    %89 = vmatprep.subr.mxu0 0.0
    %90 = vmatpush1.msra.mxu0 0.0
    %91 = vmatprep.subr.mxu0 0.0
    %92 = vmatpush1.msra.mxu0 0.0
    %93 = vmatprep.subr.mxu0 0.0
    %94 = vmatpush1.msra.mxu0 0.0
    %95 = vmatprep.subr.mxu0 0.0
    %96 = vmatpush1.msra.mxu0 0.0
    %97 = vmatprep.subr.mxu0 0.0
    %98 = vmatpush1.msra.mxu0 0.0
    %99 = vmatprep.subr.mxu0 0.0
    %100 = vmatpush1.msra.mxu0 0.0
    %101 = vmatprep.subr.mxu0 0.0
    %102 = vmatpush1.msra.mxu0 0.0
    %103 = vmatprep.subr.mxu0 0.0
    %104 = vmatpush1.msra.mxu0 0.0
    %105 = vmatprep.subr.mxu0 0.0
    %106 = vmatpush1.msra.mxu0 0.0
    %107 = vmatprep.subr.mxu0 0.0
    %108 = vmatpush1.msra.mxu0 0.0
    %109 = vmatprep.subr.mxu0 0.0
    %110 = vmatpush1.msra.mxu0 0.0
    %111 = vmatprep.subr.mxu0 0.0
    %112 = vmatpush1.msra.mxu0 0.0
    %113 = vmatprep.subr.mxu0 0.0
    %114 = vmatpush1.msra.mxu0 0.0
    %115 = vmatprep.subr.mxu0 0.0
    %116 = vmatpush1.msra.mxu0 0.0
    %117 = vmatprep.mubr.f32.mxu0 0.0
    %118 = vmatmul.mubr.f32.gmra.mrb[0].mxu0 %v29
    %v119 = vpop.f32.mrb[0].mxu0
    %v120 = vadd.f32 %v51, %v119
    %v121 = vpop.f32.mrb[0].mxu0
    %122 = vdwg.mxu0
    %123 = vst [vmem:[#allocation5] sm:$0xff] %v120
    // Predicated region
    $region18: #{linear_forward.1} parent=1 // pred_check
      _
    $region19: #{linear_forward.1} parent=1 // pred_check_branch
      %125 = sbr.rel (0) target = $region21
    $region20: #{linear_forward.1} parent=1 // pred_region
      %s127 = ssub.s32 128, 128
      %128 = vsyncadd [#allocation4], %s127
      %s130 = sshll.u32 [#allocation5], 4
      %s131 = int_to_ptr.vmem [resolvable:$true] %s130
      %133 = dma.vmem_to_hbm [thread:$0]  %s131, 128, %s3, [#allocation4]
    $region21: #{linear_forward.1} parent=1 // pred_fallthru
      _
    // Predicated region
    $region22: #{linear_forward.1} parent=1 // pred_check
      _
    $region23: #{linear_forward.1} parent=1 // pred_check_branch
      %135 = sbr.rel (0) target = $region25
    $region24: #{linear_forward.1} parent=1 // pred_region
      %136 = dma.done [#allocation4], 128
    $region25: #{linear_forward.1} parent=1 // pred_fallthru
      _
    %137 = vsyncpa [#allocation3], 1
    %138 = vsyncpa [#allocation4], 1

</llo_original>
